<compile_context>
chip_gen: v7x
topology: tpu7x:2x2x1
jax: 0.10.0
libtpu: 0.0.40
codegen_flags: <defaults>
</compile_context>

<pallas_src>
import functools

import jax
import jax.numpy as jnp
from jax.experimental import pallas as pl
from jax.experimental.pallas import tpu as pltpu

LANE = 128


def _dblock_kernel(*refs, apply_norm, neg_slope, eps, inv_hw, ka, ho, wo):
    # apply_norm:
    #   refs = (x_ref, w_ref, o_ref)            no bias (cancelled by the mean)
    # else:
    #   refs = (x_ref, w_ref, b_ref, o_ref)
    # x_ref: [Hd, Wd, C4]       bf16, space-to-depth'ed reflect-padded input
    # w_ref: [Ka, Ka, C4, CO]   bf16, rearranged conv weight tile
    # b_ref: [1, CO]            f32 bias tile (first_block only)
    # o_ref: [HW, CO]           lane-dense output tile
    if apply_norm:
        x_ref, w_ref, o_ref = refs
        b_ref = None
    else:
        x_ref, w_ref, b_ref, o_ref = refs

    hw = ho * wo
    c4 = x_ref.shape[-1]

    # Fused im2col: Ka*Ka unit-stride slices of the input block, each fed to
    # the MXU against its weight slice, accumulated in f32.
    acc = None
    for a in range(ka):
        for b in range(ka):
            xa = x_ref[pl.ds(a, ho), pl.ds(b, wo), :]       # [ho, wo, C4] bf16
            xa = xa.reshape(hw, c4)
            part = jnp.dot(xa, w_ref[a, b],
                           preferred_element_type=jnp.float32)
            acc = part if acc is None else acc + part
    y = acc                                                  # [HW, CO] f32

    if apply_norm:
        # Conv bias is a per-channel constant -> exactly cancelled by the
        # mean subtraction of InstanceNorm2d, so it is skipped entirely.
        # Single fused f32 pass (E[x^2] - E[x]^2); tolerance is loose (bf16).
        s = jnp.sum(y, axis=0, keepdims=True)
        sq = jnp.sum(y * y, axis=0, keepdims=True)
        mean = s * inv_hw
        var = jnp.maximum(sq * inv_hw - mean * mean, 0.0)    # biased variance
        y = (y - mean) * jax.lax.rsqrt(var + eps)
    else:
        y = y + b_ref[...]

    # LeakyReLU(0.2); cast only at the store.
    o_ref[...] = jnp.maximum(y, neg_slope * y).astype(o_ref.dtype)


def _pick_co_tile(cout_pad, n_batch):
    """256-wide tiles on 256-wide-MXU chips (v6e/v7x) when it keeps >=2 grid
    steps; 128 otherwise (v5e MXU is 4x128x128, wider tiles only cost VMEM)."""
    try:
        kind = jax.devices()[0].device_kind.lower()
    except Exception:  # pragma: no cover - device query is best-effort only
        kind = ""
    narrow_mxu = any(t in kind for t in ("v2", "v3", "v4", "v5e", "v5 lite",
                                         "v5lite"))
    if (not narrow_mxu and cout_pad % 256 == 0
            and n_batch * (cout_pad // 256) >= 2):
        return 256
    return LANE


def dblock_forward(x, weight, bias, *, stride=2, padding=1, first_block=False,
                   channels_last_in=False, channels_last_out=False,
                   out_dtype=None, co_tile=None):
    """DBlock forward.

    x:      [N, Cin, H, W] (NCHW) or [N, H, W, Cin] if channels_last_in.
    weight: [Cout, Cin, K, K].  bias: [Cout].
    Returns [N, Cout, Ho, Wo] (NCHW, x.dtype) by default, or NHWC bf16 when
    channels_last_out=True (for chaining blocks without relayouts).
    """
    if channels_last_in:
        N, H, W, Cin = x.shape
    else:
        N, Cin, H, W = x.shape
    Cout, cin_w, K, k2 = weight.shape
    assert cin_w == Cin and K == k2

    Hp, Wp = H + 2 * padding, W + 2 * padding
    s = stride
    assert K % s == 0 and Hp % s == 0 and Wp % s == 0, (
        "dblock_forward requires stride | kernel_size and stride | (H+2p),(W+2p)")
    Ka = K // s
    Hd, Wd = Hp // s, Wp // s
    Ho = (Hp - K) // s + 1
    Wo = (Wp - K) // s + 1
    assert Ho == Hd - Ka + 1 and Wo == Wd - Ka + 1
    HW = Ho * Wo
    C4 = s * s * Cin

    if out_dtype is None:
        out_dtype = jnp.bfloat16 if channels_last_out else x.dtype
    out_itemsize = jnp.dtype(out_dtype).itemsize

    # ---- input: reflect pad, NHWC, bf16, space-to-depth by the stride so
    # every in-kernel slice is unit stride (no sublane-strided gathers).
    if channels_last_in:
        xp = jnp.pad(x, ((0, 0), (padding, padding), (padding, padding), (0, 0)),
                     mode="reflect")
    else:
        xp = jnp.pad(x, ((0, 0), (0, 0), (padding, padding), (padding, padding)),
                     mode="reflect")
        xp = jnp.transpose(xp, (0, 2, 3, 1))                 # [N, Hp, Wp, Cin]
    xp = xp.astype(jnp.bfloat16)
    xd = (xp.reshape(N, Hd, s, Wd, s, Cin)
            .transpose(0, 1, 3, 2, 4, 5)
            .reshape(N, Hd, Wd, C4))                          # [N, Hd, Wd, s*s*Cin]

    # ---- weight: [Cout,Cin,K,K] -> [Ka, Ka, s*s*Cin, cout_pad]  (lane-dense)
    cout_pad = pl.cdiv(Cout, LANE) * LANE
    if co_tile is None:
        co_tile = _pick_co_tile(cout_pad, N)
    if cout_pad % co_tile != 0:
        co_tile = LANE
    n_co = cout_pad // co_tile

    wt = jnp.transpose(weight, (2, 3, 1, 0))                  # [K, K, Cin, Cout]
    wt = wt.reshape(Ka, s, Ka, s, Cin, Cout)
    wt = wt.transpose(0, 2, 1, 3, 4, 5).reshape(Ka, Ka, C4, Cout)
    w2 = jnp.pad(wt, ((0, 0), (0, 0), (0, 0), (0, cout_pad - Cout))
                 ).astype(jnp.bfloat16)

    apply_norm = not first_block
    kernel = functools.partial(_dblock_kernel,
                               apply_norm=apply_norm,
                               neg_slope=0.2, eps=1e-5, inv_hw=1.0 / HW,
                               ka=Ka, ho=Ho, wo=Wo)

    x_spec = pl.BlockSpec((pl.Squeezed(), Hd, Wd, C4), lambda n, c: (n, 0, 0, 0))
    w_spec = pl.BlockSpec((Ka, Ka, C4, co_tile), lambda n, c: (0, 0, 0, c))
    out_spec = pl.BlockSpec((pl.Squeezed(), HW, co_tile), lambda n, c: (n, 0, c))

    inputs = [xd, w2]
    in_specs = [x_spec, w_spec]
    bias_bytes = 0
    if not apply_norm:
        b_pad = jnp.pad(bias.astype(jnp.float32),
                        (0, cout_pad - Cout)).reshape(1, cout_pad)
        inputs.append(b_pad)
        in_specs.append(pl.BlockSpec((1, co_tile), lambda n, c: (0, c)))
        bias_bytes = cout_pad * 4

    # Megacore: shard on batch when possible so the (dominant) input block is
    # read once per chip; otherwise let the Cout-tile axis be parallel.
    dims = ("parallel", "arbitrary") if N >= 2 else ("arbitrary", "parallel")

    # VMEM budget from the actual double-buffered blocks (cap v7x-safe).
    in_blk = Hd * Wd * C4 * 2
    w_blk = Ka * Ka * C4 * co_tile * 2
    out_blk = HW * co_tile * out_itemsize
    b_blk = 8 * co_tile * 4 if not apply_norm else 0
    needed = 2 * (in_blk + w_blk + out_blk + b_blk) + (4 << 20)
    vmem_limit = int(max(32 * 1024 * 1024, min(needed, 64 * 1024 * 1024)))

    flops = 2 * N * HW * (Cin * K * K) * cout_pad
    bytes_accessed = (xd.size * 2 + w2.size * 2 + bias_bytes
                      + N * HW * cout_pad * out_itemsize)
    cost = pl.CostEstimate(flops=flops,
                           transcendentals=0 if first_block else N * cout_pad,
                           bytes_accessed=bytes_accessed)

    out = pl.pallas_call(
        kernel,
        out_shape=jax.ShapeDtypeStruct((N, HW, cout_pad), out_dtype),
        grid_spec=pltpu.PrefetchScalarGridSpec(
            num_scalar_prefetch=0,
            grid=(N, n_co),
            in_specs=in_specs,
            out_specs=out_spec,
        ),
        compiler_params=pltpu.CompilerParams(
            dimension_semantics=dims,
            vmem_limit_bytes=vmem_limit),
        cost_estimate=cost,
    )(*inputs)

    out = out[:, :, :Cout].reshape(N, Ho, Wo, Cout)           # drop channel pad
    if channels_last_out:
        return out                                            # NHWC for chaining
    return out.transpose(0, 3, 1, 2)                          # NCHW (module parity)


def _reference(x, weight, bias, *, stride, padding, first_block):
    xp = jnp.pad(x, ((0, 0), (0, 0), (padding, padding), (padding, padding)),
                 mode="reflect")
    y = jax.lax.conv_general_dilated(
        xp, weight, (stride, stride), "VALID",
        dimension_numbers=("NCHW", "OIHW", "NCHW"))
    y = y + bias.reshape(1, -1, 1, 1)
    if not first_block:
        m = y.mean(axis=(2, 3), keepdims=True)
        v = ((y - m) ** 2).mean(axis=(2, 3), keepdims=True)
        y = (y - m) * jax.lax.rsqrt(v + 1e-5)
    return jnp.where(y >= 0, y, 0.2 * y)


if __name__ == "__main__":
    key = jax.random.PRNGKey(0)
    kx, kw, kb = jax.random.split(key, 3)

    N, Cin, H, W = 2, 4, 16, 16
    Cout, K, stride, padding = 8, 4, 2, 1

    x = jax.random.normal(kx, (N, Cin, H, W), dtype=jnp.float32)
    weight = 0.1 * jax.random.normal(kw, (Cout, Cin, K, K), dtype=jnp.float32)
    bias = 0.1 * jax.random.normal(kb, (Cout,), dtype=jnp.float32)

    # NCHW f32 path (module parity), with and without InstanceNorm.
    for first_block in (False, True):
        out = dblock_forward(x, weight, bias, stride=stride, padding=padding,
                             first_block=first_block)
        out = jax.block_until_ready(out)
        ref = _reference(x, weight, bias, stride=stride, padding=padding,
                         first_block=first_block)
        assert out.shape == ref.shape, (out.shape, ref.shape)
        err = float(jnp.max(jnp.abs(out - ref)))
        # bf16 MXU matmul (f32 accumulation) vs. full-f32 reference.
        assert jnp.allclose(out, ref, rtol=5e-2, atol=5e-2), err

    # NHWC-in / NHWC-out bf16 path used for chaining blocks.
    x_nhwc = jnp.transpose(x, (0, 2, 3, 1))
    out_cl = dblock_forward(x_nhwc, weight, bias, stride=stride, padding=padding,
                            first_block=False,
                            channels_last_in=True, channels_last_out=True)
    out_cl = jax.block_until_ready(out_cl)
    ref_cl = jnp.transpose(
        _reference(x, weight, bias, stride=stride, padding=padding,
                   first_block=False), (0, 2, 3, 1))
    assert out_cl.shape == ref_cl.shape, (out_cl.shape, ref_cl.shape)
    err_cl = float(jnp.max(jnp.abs(out_cl.astype(jnp.float32) - ref_cl)))
    assert jnp.allclose(out_cl.astype(jnp.float32), ref_cl,
                        rtol=1e-1, atol=1e-1), err_cl

    print("KERNEL_OK")
</pallas_src>

<mosaic_0001>
module attributes {stable_mosaic.version = 11 : i64} {
  func.func @_dblock_kernel(%arg0: i32, %arg1: i32, %arg2: memref<1x9x9x16xbf16, #tpu.memory_space<vmem>>, %arg3: memref<2x2x16x128xbf16, #tpu.memory_space<vmem>>, %arg4: memref<1x64x128xf32, #tpu.memory_space<vmem>>) attributes {dimension_semantics = [#tpu.dimension_semantics<parallel>, #tpu.dimension_semantics<arbitrary>], iteration_bounds = array<i64: 2, 1>, scalar_prefetch = 0 : i64, scratch_operands = 0 : i64, tpu.core_type = #tpu.core_type<tc>, window_params = [{transform_indices = @transform_0, window_bounds = array<i64: 1, 9, 9, 16>}, {transform_indices = @transform_1, window_bounds = array<i64: 2, 2, 16, 128>}, {transform_indices = @transform_2, window_bounds = array<i64: 1, 64, 128>}]} {
    %c0 = arith.constant 0 : index
    %c0_0 = arith.constant 0 : index
    %c0_1 = arith.constant 0 : index
    %c0_2 = arith.constant 0 : index
    %0 = vector.load %arg2[%c0, %c0_0, %c0_1, %c0_2] : memref<1x9x9x16xbf16, #tpu.memory_space<vmem>>, vector<1x8x8x16xbf16>
    %1 = vector.shape_cast %0 : vector<1x8x8x16xbf16> to vector<8x8x16xbf16>
    %2 = vector.shape_cast %1 : vector<8x8x16xbf16> to vector<64x16xbf16>
    %c0_3 = arith.constant 0 : index
    %c0_4 = arith.constant 0 : index
    %c0_5 = arith.constant 0 : index
    %c0_6 = arith.constant 0 : index
    %3 = vector.load %arg3[%c0_3, %c0_4, %c0_5, %c0_6] : memref<2x2x16x128xbf16, #tpu.memory_space<vmem>>, vector<1x1x16x128xbf16>
    %4 = vector.shape_cast %3 : vector<1x1x16x128xbf16> to vector<16x128xbf16>
    %cst = arith.constant dense<0.000000e+00> : vector<64x128xf32>
    %5 = tpu.matmul %2, %4, %cst {dimension_numbers = #tpu.dot_dimension_numbers<[1], [0], [0], [1], [0, 0, 1, 1], [], []>} : vector<64x16xbf16>, vector<16x128xbf16>, vector<64x128xf32> -> vector<64x128xf32>
    %c0_7 = arith.constant 0 : index
    %c0_8 = arith.constant 0 : index
    %c1 = arith.constant 1 : index
    %c0_9 = arith.constant 0 : index
    %6 = vector.load %arg2[%c0_7, %c0_8, %c1, %c0_9] : memref<1x9x9x16xbf16, #tpu.memory_space<vmem>>, vector<1x8x8x16xbf16>
    %7 = vector.shape_cast %6 : vector<1x8x8x16xbf16> to vector<8x8x16xbf16>
    %8 = vector.shape_cast %7 : vector<8x8x16xbf16> to vector<64x16xbf16>
    %c0_10 = arith.constant 0 : index
    %c1_11 = arith.constant 1 : index
    %c0_12 = arith.constant 0 : index
    %c0_13 = arith.constant 0 : index
    %9 = vector.load %arg3[%c0_10, %c1_11, %c0_12, %c0_13] : memref<2x2x16x128xbf16, #tpu.memory_space<vmem>>, vector<1x1x16x128xbf16>
    %10 = vector.shape_cast %9 : vector<1x1x16x128xbf16> to vector<16x128xbf16>
    %cst_14 = arith.constant dense<0.000000e+00> : vector<64x128xf32>
    %11 = tpu.matmul %8, %10, %cst_14 {dimension_numbers = #tpu.dot_dimension_numbers<[1], [0], [0], [1], [0, 0, 1, 1], [], []>} : vector<64x16xbf16>, vector<16x128xbf16>, vector<64x128xf32> -> vector<64x128xf32>
    %12 = arith.addf %5, %11 : vector<64x128xf32>
    %c0_15 = arith.constant 0 : index
    %c1_16 = arith.constant 1 : index
    %c0_17 = arith.constant 0 : index
    %c0_18 = arith.constant 0 : index
    %13 = vector.load %arg2[%c0_15, %c1_16, %c0_17, %c0_18] : memref<1x9x9x16xbf16, #tpu.memory_space<vmem>>, vector<1x8x8x16xbf16>
    %14 = vector.shape_cast %13 : vector<1x8x8x16xbf16> to vector<8x8x16xbf16>
    %15 = vector.shape_cast %14 : vector<8x8x16xbf16> to vector<64x16xbf16>
    %c1_19 = arith.constant 1 : index
    %c0_20 = arith.constant 0 : index
    %c0_21 = arith.constant 0 : index
    %c0_22 = arith.constant 0 : index
    %16 = vector.load %arg3[%c1_19, %c0_20, %c0_21, %c0_22] : memref<2x2x16x128xbf16, #tpu.memory_space<vmem>>, vector<1x1x16x128xbf16>
    %17 = vector.shape_cast %16 : vector<1x1x16x128xbf16> to vector<16x128xbf16>
    %cst_23 = arith.constant dense<0.000000e+00> : vector<64x128xf32>
    %18 = tpu.matmul %15, %17, %cst_23 {dimension_numbers = #tpu.dot_dimension_numbers<[1], [0], [0], [1], [0, 0, 1, 1], [], []>} : vector<64x16xbf16>, vector<16x128xbf16>, vector<64x128xf32> -> vector<64x128xf32>
    %19 = arith.addf %12, %18 : vector<64x128xf32>
    %c0_24 = arith.constant 0 : index
    %c1_25 = arith.constant 1 : index
    %c1_26 = arith.constant 1 : index
    %c0_27 = arith.constant 0 : index
    %20 = vector.load %arg2[%c0_24, %c1_25, %c1_26, %c0_27] : memref<1x9x9x16xbf16, #tpu.memory_space<vmem>>, vector<1x8x8x16xbf16>
    %21 = vector.shape_cast %20 : vector<1x8x8x16xbf16> to vector<8x8x16xbf16>
    %22 = vector.shape_cast %21 : vector<8x8x16xbf16> to vector<64x16xbf16>
    %c1_28 = arith.constant 1 : index
    %c1_29 = arith.constant 1 : index
    %c0_30 = arith.constant 0 : index
    %c0_31 = arith.constant 0 : index
    %23 = vector.load %arg3[%c1_28, %c1_29, %c0_30, %c0_31] : memref<2x2x16x128xbf16, #tpu.memory_space<vmem>>, vector<1x1x16x128xbf16>
    %24 = vector.shape_cast %23 : vector<1x1x16x128xbf16> to vector<16x128xbf16>
    %cst_32 = arith.constant dense<0.000000e+00> : vector<64x128xf32>
    %25 = tpu.matmul %22, %24, %cst_32 {dimension_numbers = #tpu.dot_dimension_numbers<[1], [0], [0], [1], [0, 0, 1, 1], [], []>} : vector<64x16xbf16>, vector<16x128xbf16>, vector<64x128xf32> -> vector<64x128xf32>
    %26 = arith.addf %19, %25 : vector<64x128xf32>
    %cst_33 = arith.constant dense<0.000000e+00> : vector<128xf32>
    %27 = vector.multi_reduction <add>, %26, %cst_33 [0] : vector<64x128xf32> to vector<128xf32>
    %28 = vector.shape_cast %27 : vector<128xf32> to vector<1x128xf32>
    %29 = arith.mulf %26, %26 : vector<64x128xf32>
    %cst_34 = arith.constant dense<0.000000e+00> : vector<128xf32>
    %30 = vector.multi_reduction <add>, %29, %cst_34 [0] : vector<64x128xf32> to vector<128xf32>
    %31 = vector.shape_cast %30 : vector<128xf32> to vector<1x128xf32>
    %cst_35 = arith.constant 1.562500e-02 : f32
    %32 = vector.broadcast %cst_35 : f32 to vector<1x128xf32>
    %33 = arith.mulf %28, %32 : vector<1x128xf32>
    %cst_36 = arith.constant 1.562500e-02 : f32
    %34 = vector.broadcast %cst_36 : f32 to vector<1x128xf32>
    %35 = arith.mulf %31, %34 : vector<1x128xf32>
    %36 = arith.mulf %33, %33 : vector<1x128xf32>
    %37 = arith.subf %35, %36 : vector<1x128xf32>
    %cst_37 = arith.constant 0.000000e+00 : f32
    %38 = vector.broadcast %cst_37 : f32 to vector<1x128xf32>
    %39 = arith.maximumf %37, %38 : vector<1x128xf32>
    %40 = vector.broadcast %33 : vector<1x128xf32> to vector<64x128xf32>
    %41 = arith.subf %26, %40 : vector<64x128xf32>
    %cst_38 = arith.constant 9.99999974E-6 : f32
    %42 = vector.broadcast %cst_38 : f32 to vector<1x128xf32>
    %43 = arith.addf %39, %42 : vector<1x128xf32>
    %44 = math.rsqrt %43 : vector<1x128xf32>
    %45 = vector.broadcast %44 : vector<1x128xf32> to vector<64x128xf32>
    %46 = arith.mulf %41, %45 : vector<64x128xf32>
    %cst_39 = arith.constant 2.000000e-01 : f32
    %47 = vector.broadcast %cst_39 : f32 to vector<64x128xf32>
    %48 = arith.mulf %47, %46 : vector<64x128xf32>
    %49 = arith.maximumf %46, %48 : vector<64x128xf32>
    %c0_40 = arith.constant 0 : index
    %c0_41 = arith.constant 0 : index
    %c0_42 = arith.constant 0 : index
    %50 = vector.load %arg4[%c0_40, %c0_41, %c0_42] : memref<1x64x128xf32, #tpu.memory_space<vmem>>, vector<1x64x128xf32>
    %51 = vector.shape_cast %50 : vector<1x64x128xf32> to vector<64x128xf32>
    %52 = vector.shape_cast %49 : vector<64x128xf32> to vector<1x64x128xf32>
    tpu.vector_store %arg4[%c0_40, %c0_41, %c0_42], %52 {strides = array<i32>} : memref<1x64x128xf32, #tpu.memory_space<vmem>>, vector<1x64x128xf32>,
    return
  }
  func.func @transform_0(%arg0: i32, %arg1: i32) -> (i32, i32, i32, i32) {
    %c0_i32 = arith.constant 0 : i32
    %c0_i32_0 = arith.constant 0 : i32
    %c0_i32_1 = arith.constant 0 : i32
    %c0_i32_2 = arith.constant 0 : i32
    return %arg0, %c0_i32, %c0_i32_0, %c0_i32_1 : i32, i32, i32, i32
  }
  func.func @transform_1(%arg0: i32, %arg1: i32) -> (i32, i32, i32, i32) {
    %c0_i32 = arith.constant 0 : i32
    %c0_i32_0 = arith.constant 0 : i32
    %c0_i32_1 = arith.constant 0 : i32
    %c0_i32_2 = arith.constant 0 : i32
    return %c0_i32, %c0_i32_0, %c0_i32_1, %arg1 : i32, i32, i32, i32
  }
  func.func @transform_2(%arg0: i32, %arg1: i32) -> (i32, i32, i32) {
    %c0_i32 = arith.constant 0 : i32
    %c0_i32_0 = arith.constant 0 : i32
    return %arg0, %c0_i32, %arg1 : i32, i32, i32
  }
}

</mosaic_0001>

<llo_original>
// kernel: tpu_custom_call.1
$region0: #{tpu_custom_call.1}
  #allocation0 [shape = 'u32[]', space=smem, size = 0x4, offset = 0x4, fixed_abs, tag = 'smem constant byte address 0x4 - core index']
  #allocation1 [shape = 'u32[144,128]{1,0:T(1,128)}', space=vmem, size = 0x12000, scoped, tag = 'internal scratch']
  %s0 = inlined_call_operand.vmem [shape: bf16[2,9,9,16], index: 0, kind: input, shape index: {}]
  %s1 = inlined_call_operand.vmem [shape: bf16[2,2,16,128], index: 1, kind: input, shape index: {}]
  %s2 = inlined_call_operand.hbm [shape: f32[2,64,128], index: 2, kind: output, shape index: {}]
  %s3 = sld [smem:[#allocation0]]
  $region41: #{tpu_custom_call.1} parent=0
    _
  %s5 = ssub.s32 1, %s3
  %s6 = scalar_select 0, %s5, %s3
  $region1: #{tpu_custom_call.1} parent=0
    #allocation2 [shape = 'u8[65536]{0}', space=vmem, size = 0x10000, scoped, tag = 'output window, operand 0']
    #allocation3 [shape = 's32[2]{0}', space=sflag, size = 0x8, scoped, tag = 'scoped memory for tpu_custom_call.1']
    %7 = vsyncpa [#allocation3], 0
    %s8 = scalar_lea.sflag [#allocation3], 1
    %9 = vsyncpa %s8, 0
    loop: start=0, step=1, limit=4
    $region2: #{tpu_custom_call.1} parent=1 // loop_pre_header
      _
    $region3: #{tpu_custom_call.1} parent=1 // loop_header
      %s11 = sphi 0, %s15
      %p12 = scmp.ge.s32.totalorder %s11, 4
      %s18 = sphi 0, %s30
      %s19 = sphi 0, %s26
      %s20 = sphi 0, %s18
      %s21 = sphi 0, %s19
      %s22 = sphi 0, %s20
      %s23 = sphi 0, %s21
      %s33 = sphi 0, %s35
      %s36 = sphi 0, %s33
      %s37 = sphi 0, %s36
      %s53 = sphi 0, %s37
      %s59 = sphi 0, %s61
      %s62 = sphi 0, %s59
      %s63 = sphi 0, %s62
      %s79 = sphi 0, %s63
      %s87 = sphi 0, %s89
      %s90 = sphi 0, %s87
      %s91 = sphi 0, %s90
      %s107 = sphi 0, %s91
    $region4: #{tpu_custom_call.1} parent=1 // loop_header_branch
      %14 = sbr.rel (%p12) target = $region8
    $region5: #{tpu_custom_call.1} parent=1 // loop_body
      %s16 = ssub.s32 %s11, 1
      %s17 = ssub.s32 %s11, 2
      %s24 = sadd.s32 1, %s19
      %p25 = scmp.ge.s32.totalorder %s24, 1
      %s26 = scalar_select %p25, 0, %s24
      %s27 = sadd.s32 1, %s18
      %s28 = scalar_select %p25, %s27, %s18
      %p29 = scmp.ge.s32.totalorder %s28, 2
      %s30 = scalar_select %p29, 0, %s28
      %s31 = ssub.s32 %s18, %s30
      %p32 = scmp.eq.s32.totalorder %s31, 0
      %s34 = sadd.s32 %s33, 1
      %s35 = scalar_select %p32, %s33, %s34
      %p38 = pneg %p32
      %p39 = scmp.eq.s32.totalorder %s11, 1
      %p40 = por %p38, %p39
      %p41 = scmp.ne.s32.totalorder %s33, %s36
      %p42 = scmp.eq.s32.totalorder %s11, 0
      %p43 = por %p41, %p42
      %p44 = scmp.ne.s32.totalorder %s33, %s36
      %p45 = scmp.eq.s32.totalorder %s16, 1
      %p46 = por %p44, %p45
      %p47 = scmp.ne.s32.totalorder %s36, %s37
      %p48 = scmp.eq.s32.totalorder %s16, 0
      %p49 = por %p47, %p48
      %p50 = scmp.ne.s32.totalorder %s36, %s37
      %p51 = scmp.eq.s32.totalorder %s17, 1
      %p52 = por %p50, %p51
      %p54 = scmp.ne.s32.totalorder %s37, %s53
      %p55 = scmp.eq.s32.totalorder %s17, 0
      %p56 = por %p54, %p55
      %s57 = ssub.s32 %s19, %s26
      %p58 = scmp.eq.s32.totalorder %s57, 0
      %s60 = sadd.s32 %s59, 1
      %s61 = scalar_select %p58, %s59, %s60
      %p64 = pneg %p58
      %p65 = scmp.eq.s32.totalorder %s11, 1
      %p66 = por %p64, %p65
      %p67 = scmp.ne.s32.totalorder %s59, %s62
      %p68 = scmp.eq.s32.totalorder %s11, 0
      %p69 = por %p67, %p68
      %p70 = scmp.ne.s32.totalorder %s59, %s62
      %p71 = scmp.eq.s32.totalorder %s16, 1
      %p72 = por %p70, %p71
      %p73 = scmp.ne.s32.totalorder %s62, %s63
      %p74 = scmp.eq.s32.totalorder %s16, 0
      %p75 = por %p73, %p74
      %p76 = scmp.ne.s32.totalorder %s62, %s63
      %p77 = scmp.eq.s32.totalorder %s17, 1
      %p78 = por %p76, %p77
      %p80 = scmp.ne.s32.totalorder %s63, %s79
      %p81 = scmp.eq.s32.totalorder %s17, 0
      %p82 = por %p80, %p81
      %s83 = ssub.s32 %s18, %s30
      %s84 = ssub.s32 %s19, %s26
      %s85 = sor.u32 %s83, %s84
      %p86 = scmp.eq.s32.totalorder %s85, 0
      %s88 = sadd.s32 %s87, 1
      %s89 = scalar_select %p86, %s87, %s88
      %p92 = pneg %p86
      %p93 = scmp.eq.s32.totalorder %s11, 1
      %p94 = por %p92, %p93
      %p95 = scmp.ne.s32.totalorder %s87, %s90
      %p96 = scmp.eq.s32.totalorder %s11, 0
      %p97 = por %p95, %p96
      %p98 = scmp.ne.s32.totalorder %s87, %s90
      %p99 = scmp.eq.s32.totalorder %s16, 1
      %p100 = por %p98, %p99
      %p101 = scmp.ne.s32.totalorder %s90, %s91
      %p102 = scmp.eq.s32.totalorder %s16, 0
      %p103 = por %p101, %p102
      %p104 = scmp.ne.s32.totalorder %s90, %s91
      %p105 = scmp.eq.s32.totalorder %s17, 1
      %p106 = por %p104, %p105
      %p108 = scmp.ne.s32.totalorder %s91, %s107
      %p109 = scmp.eq.s32.totalorder %s17, 0
      %p110 = por %p108, %p109
      %p111 = scmp.le.s32.totalorder 1, %s11
      %p112 = scmp.lt.s32.totalorder %s11, 3
      %p113 = pnand %p111, %p112
      %p114 = pneg %p113
      // Predicated region
      $region9: #{tpu_custom_call.1} parent=5 // pred_check
        _
      $region10: #{tpu_custom_call.1} parent=5 // pred_check_branch
        %116 = sbr.rel (%p113) target = $region12
      $region11: #{tpu_custom_call.1} parent=5 // pred_region
        %s117 = ssub.s32 %s11, 1
        // Predicated region
        $region13: #{tpu_custom_call.1} parent=11 // pred_check
          %p118 = pneg %p75
        $region14: #{tpu_custom_call.1} parent=11 // pred_check_branch
          %120 = sbr.rel (%p118) target = $region16
        $region15: #{tpu_custom_call.1} parent=11 // pred_region
          %p121 = scmp.lt.s32.totalorder %s21, 0
          %s122 = scalar_select %p121, %s21, 0
          %s123 = smul.addr %s122, 4
          %s124 = scalar_lea.vmem %s1, %s123
        $region16: #{tpu_custom_call.1} parent=11 // pred_fallthru
          _
      $region12: #{tpu_custom_call.1} parent=5 // pred_fallthru
        _
      %p125 = scmp.lt.s32.totalorder %s11, 2
      // Predicated region
      $region17: #{tpu_custom_call.1} parent=5 // pred_check
        %p126 = pneg %p125
      $region18: #{tpu_custom_call.1} parent=5 // pred_check_branch
        %128 = sbr.rel (%p126) target = $region20
      $region19: #{tpu_custom_call.1} parent=5 // pred_region
        // Predicated region
        $region21: #{tpu_custom_call.1} parent=19 // pred_check
          %p129 = pneg %p43
        $region22: #{tpu_custom_call.1} parent=19 // pred_check_branch
          %131 = sbr.rel (%p129) target = $region24
        $region23: #{tpu_custom_call.1} parent=19 // pred_region
          %p132 = scmp.lt.s32.totalorder %s18, 1
          %s133 = scalar_select %p132, %s18, 1
          %s134 = smul.addr %s133, 18
          %s135 = smul.addr %s134, 4
          %s136 = scalar_lea.vmem %s0, %s135
        $region24: #{tpu_custom_call.1} parent=19 // pred_fallthru
          _
      $region20: #{tpu_custom_call.1} parent=5 // pred_fallthru
        _
      %p137 = scmp.le.s32.totalorder 1, %s11
      %p138 = scmp.lt.s32.totalorder %s11, 3
      %p139 = pnand %p137, %p138
      %p140 = pneg %p139
      // Predicated region
      $region25: #{tpu_custom_call.1} parent=5 // pred_check
        _
      $region26: #{tpu_custom_call.1} parent=5 // pred_check_branch
        %142 = sbr.rel (%p139) target = $region28
      $region27: #{tpu_custom_call.1} parent=5 // pred_region
        %s143 = ssub.s32 %s11, 1
        %p144 = scmp.lt.s32.totalorder %s20, 1
        %s145 = scalar_select %p144, %s20, 1
        %s146 = smul.addr %s145, 18
        %s147 = smul.addr %s146, 4
        %s148 = scalar_lea.vmem %s0, %s147
        %p149 = pneg %p49
        %p150 = pneg %p46
        %p151 = scmp.lt.s32.totalorder %s21, 0
        %s152 = scalar_select %p151, %s21, 0
        %s153 = smul.addr %s152, 4
        %s154 = scalar_lea.vmem %s1, %s153
        %p155 = pneg %p75
        %p156 = pneg %p72
        %p157 = pneg %p103
        %p158 = pneg %p100
        %s159 = sand.u32 %s90, 1
        %s160 = scalar_lea.sflag [#allocation3], %s159
        %s161 = sand.u32 %s90, 1
        %s162 = smul.addr %s161, 64
        %s163 = scalar_lea.vmem [#allocation2], %s162
        %p164 = scmp.lt.s32.totalorder %s20, 1
        %s165 = scalar_select %p164, %s20, 1
        %s166 = smul.addr %s165, 18
        %s167 = smul.addr %s166, 4
        %s168 = scalar_lea.vmem %s0, %s167
        %p169 = scmp.lt.s32.totalorder %s21, 0
        %s170 = scalar_select %p169, %s21, 0
        %s171 = smul.addr %s170, 4
        %s172 = scalar_lea.vmem %s1, %s171
        %v174 = vld [vmem:[%s168] sm:$0xf]
        %v175 = vld [vmem:[%s168 + $0x8] sm:$0xf]
        %v176 = vld [vmem:[%s168 + $0x10] sm:$0xf]
        %v177 = vld [vmem:[%s168 + $0x18] sm:$0xf]
        %v178 = vld [vmem:[%s168 + $0x20] sm:$0xf]
        %v179 = vld [vmem:[%s168 + $0x28] sm:$0xf]
        %v180 = vld [vmem:[%s168 + $0x30] sm:$0xf]
        %v181 = vld [vmem:[%s168 + $0x38] sm:$0xf]
        %v182 = vld [vmem:[%s172] sm:$0xf]
        %v183 = vld [vmem:[%s172 + $0x4] sm:$0xf]
        %v184 = vld [vmem:[%s168 + $0x4] sm:$0x1]
        %v185 = vld [vmem:[%s168 + $0xc] sm:$0x1]
        %v186 = vld [vmem:[%s168 + $0x14] sm:$0x1]
        %v187 = vld [vmem:[%s168 + $0x1c] sm:$0x1]
        %v188 = vld [vmem:[%s168 + $0x24] sm:$0x1]
        %v189 = vld [vmem:[%s168 + $0x2c] sm:$0x1]
        %v190 = vld [vmem:[%s168 + $0x34] sm:$0x1]
        %v191 = vld [vmem:[%s168 + $0x3c] sm:$0x1]
        %vm192 = vsmask.f32 3328
        %vm193 = vsmask.f32 7440
        %vm194 = vmor %vm192, %vm193
        %v196 = vshrl.u32 %v174, 16
        %v198 = vrot.slane %v196, 4
        %v199 = vshll.u32 %v174, 16
        %v201 = vrot.slane %v199, 5
        %v202 = vor.u32 %v198, %v201
        %v203 = vrot.slane %v202, 4
        %v205 = vshll.u32 %v184, 16
        %v207 = vrot.slane %v205, 5
        %v208 = vsel %vm194, %v203, %v207
        %v210 = vshrl.u32 %v175, 16
        %v212 = vrot.slane %v210, 4
        %v213 = vshll.u32 %v175, 16
        %v215 = vrot.slane %v213, 5
        %v216 = vor.u32 %v212, %v215
        %v217 = vrot.slane %v216, 4
        %v219 = vshll.u32 %v185, 16
        %v221 = vrot.slane %v219, 5
        %v222 = vsel %vm194, %v217, %v221
        %v224 = vshrl.u32 %v176, 16
        %v226 = vrot.slane %v224, 4
        %v227 = vshll.u32 %v176, 16
        %v229 = vrot.slane %v227, 5
        %v230 = vor.u32 %v226, %v229
        %v231 = vrot.slane %v230, 4
        %v233 = vshll.u32 %v186, 16
        %v235 = vrot.slane %v233, 5
        %v236 = vsel %vm194, %v231, %v235
        %v238 = vshrl.u32 %v177, 16
        %v240 = vrot.slane %v238, 4
        %v241 = vshll.u32 %v177, 16
        %v243 = vrot.slane %v241, 5
        %v244 = vor.u32 %v240, %v243
        %v245 = vrot.slane %v244, 4
        %v247 = vshll.u32 %v187, 16
        %v249 = vrot.slane %v247, 5
        %v250 = vsel %vm194, %v245, %v249
        %v252 = vshrl.u32 %v178, 16
        %v254 = vrot.slane %v252, 4
        %v255 = vshll.u32 %v178, 16
        %v257 = vrot.slane %v255, 5
        %v258 = vor.u32 %v254, %v257
        %v259 = vrot.slane %v258, 4
        %v261 = vshll.u32 %v188, 16
        %v263 = vrot.slane %v261, 5
        %v264 = vsel %vm194, %v259, %v263
        %v266 = vshrl.u32 %v179, 16
        %v268 = vrot.slane %v266, 4
        %v269 = vshll.u32 %v179, 16
        %v271 = vrot.slane %v269, 5
        %v272 = vor.u32 %v268, %v271
        %v273 = vrot.slane %v272, 4
        %v275 = vshll.u32 %v189, 16
        %v277 = vrot.slane %v275, 5
        %v278 = vsel %vm194, %v273, %v277
        %v280 = vshrl.u32 %v180, 16
        %v282 = vrot.slane %v280, 4
        %v283 = vshll.u32 %v180, 16
        %v285 = vrot.slane %v283, 5
        %v286 = vor.u32 %v282, %v285
        %v287 = vrot.slane %v286, 4
        %v289 = vshll.u32 %v190, 16
        %v291 = vrot.slane %v289, 5
        %v292 = vsel %vm194, %v287, %v291
        %v294 = vshrl.u32 %v181, 16
        %v296 = vrot.slane %v294, 4
        %v297 = vshll.u32 %v181, 16
        %v299 = vrot.slane %v297, 5
        %v300 = vor.u32 %v296, %v299
        %v301 = vrot.slane %v300, 4
        %v303 = vshll.u32 %v191, 16
        %v305 = vrot.slane %v303, 5
        %v306 = vsel %vm194, %v301, %v305
        %s307 = scalar_lea.vmem %s172, 8
        %v308 = vld [vmem:[%s307] sm:$0xf]
        %v309 = vld [vmem:[%s307 + $0x4] sm:$0xf]
        %v310 = vunpack.c.l.b16 %v208
        %v311 = vunpack.c.l.b16 %v222
        %v312 = vunpack.c.l.b16 %v236
        %v313 = vunpack.c.l.b16 %v250
        %v314 = vunpack.c.l.b16 %v264
        %v315 = vunpack.c.l.b16 %v278
        %v316 = vunpack.c.l.b16 %v292
        %v317 = vunpack.c.l.b16 %v306
        %v318 = vpack.c.b16 %v311, %v310
        %v319 = vpack.c.b16 %v313, %v312
        %v320 = vpack.c.b16 %v315, %v314
        %v321 = vpack.c.b16 %v317, %v316
        %v324 = vunpack.c.l.b16 %v308
        %v325 = vunpack.c.l.b16 %v309
        %v326 = vpack.c.b16 %v325, %v324
        %vm328 = vcmask 130048
        %v330 = vsel %vm328, %v318, 0
        %v333 = vsel %vm328, %v319, 0
        %v336 = vsel %vm328, %v320, 0
        %v339 = vsel %vm328, %v321, 0
        %341 = vmatprep.subr.bf16.mxu0 0
        %342 = vmatpush1.bf16.msra.mxu0 %v326
        %343 = vmatprep.subr.bf16.mxu0 0
        %344 = vmatpush1.bf16.msra.mxu0 0
        %345 = vmatprep.subr.bf16.mxu0 0
        %346 = vmatpush1.bf16.msra.mxu0 0
        %347 = vmatprep.subr.bf16.mxu0 0
        %348 = vmatpush1.bf16.msra.mxu0 0
        %349 = vmatprep.subr.bf16.mxu0 0
        %350 = vmatpush1.bf16.msra.mxu0 0
        %351 = vmatprep.subr.bf16.mxu0 0
        %352 = vmatpush1.bf16.msra.mxu0 0
        %353 = vmatprep.subr.bf16.mxu0 0
        %354 = vmatpush1.bf16.msra.mxu0 0
        %355 = vmatprep.subr.bf16.mxu0 0
        %356 = vmatpush1.bf16.msra.mxu0 0
        %357 = vmatprep.subr.bf16.mxu0 0
        %358 = vmatpush1.bf16.msra.mxu0 0
        %359 = vmatprep.subr.bf16.mxu0 0
        %360 = vmatpush1.bf16.msra.mxu0 0
        %361 = vmatprep.subr.bf16.mxu0 0
        %362 = vmatpush1.bf16.msra.mxu0 0
        %363 = vmatprep.subr.bf16.mxu0 0
        %364 = vmatpush1.bf16.msra.mxu0 0
        %365 = vmatprep.subr.bf16.mxu0 0
        %366 = vmatpush1.bf16.msra.mxu0 0
        %367 = vmatprep.subr.bf16.mxu0 0
        %368 = vmatpush1.bf16.msra.mxu0 0
        %369 = vmatprep.subr.bf16.mxu0 0
        %370 = vmatpush1.bf16.msra.mxu0 0
        %371 = vmatprep.subr.bf16.mxu0 0
        %372 = vmatpush1.bf16.msra.mxu0 0
        %373 = vmatprep.mubr.bf16.mxu0 0
        %374 = vmatmul.mubr.bf16.gmra.mrb[0].mxu0 %v330
        %v375 = vpop.f32.mrb[0].mxu0
        %v376 = vadd.f32 0.0, %v375
        %v377 = vpop.f32.mrb[0].mxu0
        %v378 = vpop.f32.mrb[0].mxu0
        %v379 = vadd.f32 0.0, %v378
        %v380 = vpop.f32.mrb[0].mxu0
        %381 = vmatprep.mubr.bf16.mxu0 0
        %382 = vmatmul.mubr.bf16.gmra.mrb[0].mxu0 %v333
        %v383 = vpop.f32.mrb[0].mxu0
        %v384 = vadd.f32 0.0, %v383
        %v385 = vpop.f32.mrb[0].mxu0
        %v386 = vpop.f32.mrb[0].mxu0
        %v387 = vadd.f32 0.0, %v386
        %v388 = vpop.f32.mrb[0].mxu0
        %389 = vmatprep.mubr.bf16.mxu0 0
        %390 = vmatmul.mubr.bf16.gmra.mrb[0].mxu0 %v336
        %v391 = vpop.f32.mrb[0].mxu0
        %v392 = vadd.f32 0.0, %v391
        %v393 = vpop.f32.mrb[0].mxu0
        %v394 = vpop.f32.mrb[0].mxu0
        %v395 = vadd.f32 0.0, %v394
        %v396 = vpop.f32.mrb[0].mxu0
        %397 = vmatprep.mubr.bf16.mxu0 0
        %398 = vmatmul.mubr.bf16.gmra.mrb[0].mxu0 %v339
        %v399 = vpop.f32.mrb[0].mxu0
        %v400 = vadd.f32 0.0, %v399
        %v401 = vpop.f32.mrb[0].mxu0
        %v402 = vpop.f32.mrb[0].mxu0
        %v403 = vadd.f32 0.0, %v402
        %v404 = vpop.f32.mrb[0].mxu0
        %405 = vdwg.mxu0
        %v414 = vunpack.c.l.b16 %v174
        %v415 = vunpack.c.l.b16 %v175
        %v416 = vunpack.c.l.b16 %v176
        %v417 = vunpack.c.l.b16 %v177
        %v418 = vunpack.c.l.b16 %v178
        %v419 = vunpack.c.l.b16 %v179
        %v420 = vunpack.c.l.b16 %v180
        %v421 = vunpack.c.l.b16 %v181
        %v422 = vpack.c.b16 %v415, %v414
        %v423 = vpack.c.b16 %v417, %v416
        %v424 = vpack.c.b16 %v419, %v418
        %v425 = vpack.c.b16 %v421, %v420
        %v428 = vunpack.c.l.b16 %v182
        %v429 = vunpack.c.l.b16 %v183
        %v430 = vpack.c.b16 %v429, %v428
        %v433 = vsel %vm328, %v422, 0
        %v436 = vsel %vm328, %v423, 0
        %v439 = vsel %vm328, %v424, 0
        %v442 = vsel %vm328, %v425, 0
        %444 = vmatprep.subr.bf16.mxu0 0
        %445 = vmatpush1.bf16.msra.mxu0 %v430
        %446 = vmatprep.subr.bf16.mxu0 0
        %447 = vmatpush1.bf16.msra.mxu0 0
        %448 = vmatprep.subr.bf16.mxu0 0
        %449 = vmatpush1.bf16.msra.mxu0 0
        %450 = vmatprep.subr.bf16.mxu0 0
        %451 = vmatpush1.bf16.msra.mxu0 0
        %452 = vmatprep.subr.bf16.mxu0 0
        %453 = vmatpush1.bf16.msra.mxu0 0
        %454 = vmatprep.subr.bf16.mxu0 0
        %455 = vmatpush1.bf16.msra.mxu0 0
        %456 = vmatprep.subr.bf16.mxu0 0
        %457 = vmatpush1.bf16.msra.mxu0 0
        %458 = vmatprep.subr.bf16.mxu0 0
        %459 = vmatpush1.bf16.msra.mxu0 0
        %460 = vmatprep.subr.bf16.mxu0 0
        %461 = vmatpush1.bf16.msra.mxu0 0
        %462 = vmatprep.subr.bf16.mxu0 0
        %463 = vmatpush1.bf16.msra.mxu0 0
        %464 = vmatprep.subr.bf16.mxu0 0
        %465 = vmatpush1.bf16.msra.mxu0 0
        %466 = vmatprep.subr.bf16.mxu0 0
        %467 = vmatpush1.bf16.msra.mxu0 0
        %468 = vmatprep.subr.bf16.mxu0 0
        %469 = vmatpush1.bf16.msra.mxu0 0
        %470 = vmatprep.subr.bf16.mxu0 0
        %471 = vmatpush1.bf16.msra.mxu0 0
        %472 = vmatprep.subr.bf16.mxu0 0
        %473 = vmatpush1.bf16.msra.mxu0 0
        %474 = vmatprep.subr.bf16.mxu0 0
        %475 = vmatpush1.bf16.msra.mxu0 0
        %476 = vmatprep.mubr.bf16.mxu0 0
        %477 = vmatmul.mubr.bf16.gmra.mrb[0].mxu0 %v433
        %v478 = vpop.f32.mrb[0].mxu0
        %v479 = vadd.f32 %v376, %v478
        %v480 = vpop.f32.mrb[0].mxu0
        %v481 = vpop.f32.mrb[0].mxu0
        %v482 = vadd.f32 %v379, %v481
        %v483 = vpop.f32.mrb[0].mxu0
        %484 = vmatprep.mubr.bf16.mxu0 0
        %485 = vmatmul.mubr.bf16.gmra.mrb[0].mxu0 %v436
        %v486 = vpop.f32.mrb[0].mxu0
        %v487 = vadd.f32 %v384, %v486
        %v488 = vpop.f32.mrb[0].mxu0
        %v489 = vpop.f32.mrb[0].mxu0
        %v490 = vadd.f32 %v387, %v489
        %v491 = vpop.f32.mrb[0].mxu0
        %492 = vmatprep.mubr.bf16.mxu0 0
        %493 = vmatmul.mubr.bf16.gmra.mrb[0].mxu0 %v439
        %v494 = vpop.f32.mrb[0].mxu0
        %v495 = vadd.f32 %v392, %v494
        %v496 = vpop.f32.mrb[0].mxu0
        %v497 = vpop.f32.mrb[0].mxu0
        %v498 = vadd.f32 %v395, %v497
        %v499 = vpop.f32.mrb[0].mxu0
        %500 = vmatprep.mubr.bf16.mxu0 0
        %501 = vmatmul.mubr.bf16.gmra.mrb[0].mxu0 %v442
        %v502 = vpop.f32.mrb[0].mxu0
        %v503 = vadd.f32 %v400, %v502
        %v504 = vpop.f32.mrb[0].mxu0
        %v505 = vpop.f32.mrb[0].mxu0
        %v506 = vadd.f32 %v403, %v505
        %v507 = vpop.f32.mrb[0].mxu0
        %508 = vdwg.mxu0
        %s509 = scalar_lea.vmem %s168, 8
        %v510 = vld [vmem:[%s509] sm:$0xf]
        %v511 = vld [vmem:[%s509 + $0x8] sm:$0xf]
        %v512 = vld [vmem:[%s509 + $0x10] sm:$0xf]
        %v513 = vld [vmem:[%s509 + $0x18] sm:$0xf]
        %v514 = vld [vmem:[%s509 + $0x20] sm:$0xf]
        %v515 = vld [vmem:[%s509 + $0x28] sm:$0xf]
        %v516 = vld [vmem:[%s509 + $0x30] sm:$0xf]
        %v517 = vld [vmem:[%s509 + $0x38] sm:$0xf]
        %s518 = scalar_lea.vmem %s172, 16
        %v519 = vld [vmem:[%s518] sm:$0xf]
        %v520 = vld [vmem:[%s518 + $0x4] sm:$0xf]
        %v529 = vunpack.c.l.b16 %v510
        %v530 = vunpack.c.l.b16 %v511
        %v531 = vunpack.c.l.b16 %v512
        %v532 = vunpack.c.l.b16 %v513
        %v533 = vunpack.c.l.b16 %v514
        %v534 = vunpack.c.l.b16 %v515
        %v535 = vunpack.c.l.b16 %v516
        %v536 = vunpack.c.l.b16 %v517
        %v537 = vpack.c.b16 %v530, %v529
        %v538 = vpack.c.b16 %v532, %v531
        %v539 = vpack.c.b16 %v534, %v533
        %v540 = vpack.c.b16 %v536, %v535
        %v543 = vunpack.c.l.b16 %v519
        %v544 = vunpack.c.l.b16 %v520
        %v545 = vpack.c.b16 %v544, %v543
        %v548 = vsel %vm328, %v537, 0
        %v551 = vsel %vm328, %v538, 0
        %v554 = vsel %vm328, %v539, 0
        %v557 = vsel %vm328, %v540, 0
        %559 = vmatprep.subr.bf16.mxu0 0
        %560 = vmatpush1.bf16.msra.mxu0 %v545
        %561 = vmatprep.subr.bf16.mxu0 0
        %562 = vmatpush1.bf16.msra.mxu0 0
        %563 = vmatprep.subr.bf16.mxu0 0
        %564 = vmatpush1.bf16.msra.mxu0 0
        %565 = vmatprep.subr.bf16.mxu0 0
        %566 = vmatpush1.bf16.msra.mxu0 0
        %567 = vmatprep.subr.bf16.mxu0 0
        %568 = vmatpush1.bf16.msra.mxu0 0
        %569 = vmatprep.subr.bf16.mxu0 0
        %570 = vmatpush1.bf16.msra.mxu0 0
        %571 = vmatprep.subr.bf16.mxu0 0
        %572 = vmatpush1.bf16.msra.mxu0 0
        %573 = vmatprep.subr.bf16.mxu0 0
        %574 = vmatpush1.bf16.msra.mxu0 0
        %575 = vmatprep.subr.bf16.mxu0 0
        %576 = vmatpush1.bf16.msra.mxu0 0
        %577 = vmatprep.subr.bf16.mxu0 0
        %578 = vmatpush1.bf16.msra.mxu0 0
        %579 = vmatprep.subr.bf16.mxu0 0
        %580 = vmatpush1.bf16.msra.mxu0 0
        %581 = vmatprep.subr.bf16.mxu0 0
        %582 = vmatpush1.bf16.msra.mxu0 0
        %583 = vmatprep.subr.bf16.mxu0 0
        %584 = vmatpush1.bf16.msra.mxu0 0
        %585 = vmatprep.subr.bf16.mxu0 0
        %586 = vmatpush1.bf16.msra.mxu0 0
        %587 = vmatprep.subr.bf16.mxu0 0
        %588 = vmatpush1.bf16.msra.mxu0 0
        %589 = vmatprep.subr.bf16.mxu0 0
        %590 = vmatpush1.bf16.msra.mxu0 0
        %591 = vmatprep.mubr.bf16.mxu0 0
        %592 = vmatmul.mubr.bf16.gmra.mrb[0].mxu0 %v548
        %v593 = vpop.f32.mrb[0].mxu0
        %v594 = vadd.f32 0.0, %v593
        %v595 = vpop.f32.mrb[0].mxu0
        %v596 = vpop.f32.mrb[0].mxu0
        %v597 = vadd.f32 0.0, %v596
        %v598 = vpop.f32.mrb[0].mxu0
        %599 = vmatprep.mubr.bf16.mxu0 0
        %600 = vmatmul.mubr.bf16.gmra.mrb[0].mxu0 %v551
        %v601 = vpop.f32.mrb[0].mxu0
        %v602 = vadd.f32 0.0, %v601
        %v603 = vpop.f32.mrb[0].mxu0
        %v604 = vpop.f32.mrb[0].mxu0
        %v605 = vadd.f32 0.0, %v604
        %v606 = vpop.f32.mrb[0].mxu0
        %607 = vmatprep.mubr.bf16.mxu0 0
        %608 = vmatmul.mubr.bf16.gmra.mrb[0].mxu0 %v554
        %v609 = vpop.f32.mrb[0].mxu0
        %v610 = vadd.f32 0.0, %v609
        %v611 = vpop.f32.mrb[0].mxu0
        %v612 = vpop.f32.mrb[0].mxu0
        %v613 = vadd.f32 0.0, %v612
        %v614 = vpop.f32.mrb[0].mxu0
        %615 = vmatprep.mubr.bf16.mxu0 0
        %616 = vmatmul.mubr.bf16.gmra.mrb[0].mxu0 %v557
        %v617 = vpop.f32.mrb[0].mxu0
        %v618 = vadd.f32 0.0, %v617
        %v619 = vpop.f32.mrb[0].mxu0
        %v620 = vpop.f32.mrb[0].mxu0
        %v621 = vadd.f32 0.0, %v620
        %v622 = vpop.f32.mrb[0].mxu0
        %623 = vdwg.mxu0
        %v624 = vadd.f32 %v479, %v594
        %v625 = vadd.f32 %v482, %v597
        %v626 = vadd.f32 %v487, %v602
        %v627 = vadd.f32 %v490, %v605
        %v628 = vadd.f32 %v495, %v610
        %v629 = vadd.f32 %v498, %v613
        %v630 = vadd.f32 %v503, %v618
        %v631 = vadd.f32 %v506, %v621
        %v632 = vld [vmem:[%s509] sm:$0xf]
        %v633 = vld [vmem:[%s509 + $0x4] sm:$0x1]
        %v634 = vld [vmem:[%s509 + $0x8] sm:$0xf]
        %v635 = vld [vmem:[%s509 + $0xc] sm:$0x1]
        %v636 = vld [vmem:[%s509 + $0x10] sm:$0xf]
        %v637 = vld [vmem:[%s509 + $0x14] sm:$0x1]
        %v638 = vld [vmem:[%s509 + $0x18] sm:$0xf]
        %v639 = vld [vmem:[%s509 + $0x1c] sm:$0x1]
        %v640 = vld [vmem:[%s509 + $0x20] sm:$0xf]
        %v641 = vld [vmem:[%s509 + $0x24] sm:$0x1]
        %v642 = vld [vmem:[%s509 + $0x28] sm:$0xf]
        %v643 = vld [vmem:[%s509 + $0x2c] sm:$0x1]
        %v644 = vld [vmem:[%s509 + $0x30] sm:$0xf]
        %v645 = vld [vmem:[%s509 + $0x34] sm:$0x1]
        %v646 = vld [vmem:[%s509 + $0x38] sm:$0xf]
        %v647 = vld [vmem:[%s509 + $0x3c] sm:$0x1]
        %v649 = vshrl.u32 %v632, 16
        %v651 = vrot.slane %v649, 4
        %v652 = vshll.u32 %v632, 16
        %v654 = vrot.slane %v652, 5
        %v655 = vor.u32 %v651, %v654
        %v656 = vrot.slane %v655, 4
        %v658 = vshll.u32 %v633, 16
        %v660 = vrot.slane %v658, 5
        %v661 = vsel %vm194, %v656, %v660
        %v663 = vshrl.u32 %v634, 16
        %v665 = vrot.slane %v663, 4
        %v666 = vshll.u32 %v634, 16
        %v668 = vrot.slane %v666, 5
        %v669 = vor.u32 %v665, %v668
        %v670 = vrot.slane %v669, 4
        %v672 = vshll.u32 %v635, 16
        %v674 = vrot.slane %v672, 5
        %v675 = vsel %vm194, %v670, %v674
        %v677 = vshrl.u32 %v636, 16
        %v679 = vrot.slane %v677, 4
        %v680 = vshll.u32 %v636, 16
        %v682 = vrot.slane %v680, 5
        %v683 = vor.u32 %v679, %v682
        %v684 = vrot.slane %v683, 4
        %v686 = vshll.u32 %v637, 16
        %v688 = vrot.slane %v686, 5
        %v689 = vsel %vm194, %v684, %v688
        %v691 = vshrl.u32 %v638, 16
        %v693 = vrot.slane %v691, 4
        %v694 = vshll.u32 %v638, 16
        %v696 = vrot.slane %v694, 5
        %v697 = vor.u32 %v693, %v696
        %v698 = vrot.slane %v697, 4
        %v700 = vshll.u32 %v639, 16
        %v702 = vrot.slane %v700, 5
        %v703 = vsel %vm194, %v698, %v702
        %v705 = vshrl.u32 %v640, 16
        %v707 = vrot.slane %v705, 4
        %v708 = vshll.u32 %v640, 16
        %v710 = vrot.slane %v708, 5
        %v711 = vor.u32 %v707, %v710
        %v712 = vrot.slane %v711, 4
        %v714 = vshll.u32 %v641, 16
        %v716 = vrot.slane %v714, 5
        %v717 = vsel %vm194, %v712, %v716
        %v719 = vshrl.u32 %v642, 16
        %v721 = vrot.slane %v719, 4
        %v722 = vshll.u32 %v642, 16
        %v724 = vrot.slane %v722, 5
        %v725 = vor.u32 %v721, %v724
        %v726 = vrot.slane %v725, 4
        %v728 = vshll.u32 %v643, 16
        %v730 = vrot.slane %v728, 5
        %v731 = vsel %vm194, %v726, %v730
        %v733 = vshrl.u32 %v644, 16
        %v735 = vrot.slane %v733, 4
        %v736 = vshll.u32 %v644, 16
        %v738 = vrot.slane %v736, 5
        %v739 = vor.u32 %v735, %v738
        %v740 = vrot.slane %v739, 4
        %v742 = vshll.u32 %v645, 16
        %v744 = vrot.slane %v742, 5
        %v745 = vsel %vm194, %v740, %v744
        %v747 = vshrl.u32 %v646, 16
        %v749 = vrot.slane %v747, 4
        %v750 = vshll.u32 %v646, 16
        %v752 = vrot.slane %v750, 5
        %v753 = vor.u32 %v749, %v752
        %v754 = vrot.slane %v753, 4
        %v756 = vshll.u32 %v647, 16
        %v758 = vrot.slane %v756, 5
        %v759 = vsel %vm194, %v754, %v758
        %s760 = scalar_lea.vmem %s172, 24
        %v761 = vld [vmem:[%s760] sm:$0xf]
        %v762 = vld [vmem:[%s760 + $0x4] sm:$0xf]
        %v763 = vunpack.c.l.b16 %v661
        %v764 = vunpack.c.l.b16 %v675
        %v765 = vunpack.c.l.b16 %v689
        %v766 = vunpack.c.l.b16 %v703
        %v767 = vunpack.c.l.b16 %v717
        %v768 = vunpack.c.l.b16 %v731
        %v769 = vunpack.c.l.b16 %v745
        %v770 = vunpack.c.l.b16 %v759
        %v771 = vpack.c.b16 %v764, %v763
        %v772 = vpack.c.b16 %v766, %v765
        %v773 = vpack.c.b16 %v768, %v767
        %v774 = vpack.c.b16 %v770, %v769
        %v777 = vunpack.c.l.b16 %v761
        %v778 = vunpack.c.l.b16 %v762
        %v779 = vpack.c.b16 %v778, %v777
        %v782 = vsel %vm328, %v771, 0
        %v785 = vsel %vm328, %v772, 0
        %v788 = vsel %vm328, %v773, 0
        %v791 = vsel %vm328, %v774, 0
        %793 = vmatprep.subr.bf16.mxu0 0
        %794 = vmatpush1.bf16.msra.mxu0 %v779
        %795 = vmatprep.subr.bf16.mxu0 0
        %796 = vmatpush1.bf16.msra.mxu0 0
        %797 = vmatprep.subr.bf16.mxu0 0
        %798 = vmatpush1.bf16.msra.mxu0 0
        %799 = vmatprep.subr.bf16.mxu0 0
        %800 = vmatpush1.bf16.msra.mxu0 0
        %801 = vmatprep.subr.bf16.mxu0 0
        %802 = vmatpush1.bf16.msra.mxu0 0
        %803 = vmatprep.subr.bf16.mxu0 0
        %804 = vmatpush1.bf16.msra.mxu0 0
        %805 = vmatprep.subr.bf16.mxu0 0
        %806 = vmatpush1.bf16.msra.mxu0 0
        %807 = vmatprep.subr.bf16.mxu0 0
        %808 = vmatpush1.bf16.msra.mxu0 0
        %809 = vmatprep.subr.bf16.mxu0 0
        %810 = vmatpush1.bf16.msra.mxu0 0
        %811 = vmatprep.subr.bf16.mxu0 0
        %812 = vmatpush1.bf16.msra.mxu0 0
        %813 = vmatprep.subr.bf16.mxu0 0
        %814 = vmatpush1.bf16.msra.mxu0 0
        %815 = vmatprep.subr.bf16.mxu0 0
        %816 = vmatpush1.bf16.msra.mxu0 0
        %817 = vmatprep.subr.bf16.mxu0 0
        %818 = vmatpush1.bf16.msra.mxu0 0
        %819 = vmatprep.subr.bf16.mxu0 0
        %820 = vmatpush1.bf16.msra.mxu0 0
        %821 = vmatprep.subr.bf16.mxu0 0
        %822 = vmatpush1.bf16.msra.mxu0 0
        %823 = vmatprep.subr.bf16.mxu0 0
        %824 = vmatpush1.bf16.msra.mxu0 0
        %825 = vmatprep.mubr.bf16.mxu0 0
        %826 = vmatmul.mubr.bf16.gmra.mrb[0].mxu0 %v782
        %v827 = vpop.f32.mrb[0].mxu0
        %v828 = vadd.f32 0.0, %v827
        %v829 = vpop.f32.mrb[0].mxu0
        %v830 = vpop.f32.mrb[0].mxu0
        %v831 = vadd.f32 0.0, %v830
        %v832 = vpop.f32.mrb[0].mxu0
        %833 = vmatprep.mubr.bf16.mxu0 0
        %834 = vmatmul.mubr.bf16.gmra.mrb[0].mxu0 %v785
        %v835 = vpop.f32.mrb[0].mxu0
        %v836 = vadd.f32 0.0, %v835
        %v837 = vpop.f32.mrb[0].mxu0
        %v838 = vpop.f32.mrb[0].mxu0
        %v839 = vadd.f32 0.0, %v838
        %v840 = vpop.f32.mrb[0].mxu0
        %841 = vmatprep.mubr.bf16.mxu0 0
        %842 = vmatmul.mubr.bf16.gmra.mrb[0].mxu0 %v788
        %v843 = vpop.f32.mrb[0].mxu0
        %v844 = vadd.f32 0.0, %v843
        %v845 = vpop.f32.mrb[0].mxu0
        %v846 = vpop.f32.mrb[0].mxu0
        %v847 = vadd.f32 0.0, %v846
        %v848 = vpop.f32.mrb[0].mxu0
        %849 = vmatprep.mubr.bf16.mxu0 0
        %850 = vmatmul.mubr.bf16.gmra.mrb[0].mxu0 %v791
        %v851 = vpop.f32.mrb[0].mxu0
        %v852 = vadd.f32 0.0, %v851
        %v853 = vpop.f32.mrb[0].mxu0
        %v854 = vpop.f32.mrb[0].mxu0
        %v855 = vadd.f32 0.0, %v854
        %v856 = vpop.f32.mrb[0].mxu0
        %857 = vdwg.mxu0
        %v858 = vadd.f32 %v624, %v828
        %v859 = vadd.f32 %v625, %v831
        %v860 = vadd.f32 %v626, %v836
        %v861 = vadd.f32 %v627, %v839
        %v862 = vadd.f32 %v628, %v844
        %v863 = vadd.f32 %v629, %v847
        %v864 = vadd.f32 %v630, %v852
        %v865 = vadd.f32 %v631, %v855
        %v866 = vadd.f32 %v858, %v859
        %v867 = vadd.f32 %v866, %v860
        %v868 = vadd.f32 %v867, %v861
        %v869 = vadd.f32 %v868, %v862
        %v870 = vadd.f32 %v869, %v863
        %v871 = vadd.f32 %v870, %v864
        %v872 = vadd.f32 %v871, %v865
        %v873 = vrot.slane %v872, 4
        %v874 = vadd.f32 %v872, %v873
        %v875 = vrot.slane %v874, 2
        %v876 = vadd.f32 %v874, %v875
        %v877 = vrot.slane %v876, 1
        %v878 = vadd.f32 %v876, %v877
        %v879 = vmul.f32 %v858, %v858
        %v880 = vmul.f32 %v859, %v859
        %v881 = vmul.f32 %v860, %v860
        %v882 = vmul.f32 %v861, %v861
        %v883 = vmul.f32 %v862, %v862
        %v884 = vmul.f32 %v863, %v863
        %v885 = vmul.f32 %v864, %v864
        %v886 = vmul.f32 %v865, %v865
        %v887 = vadd.f32 %v879, %v880
        %v888 = vadd.f32 %v887, %v881
        %v889 = vadd.f32 %v888, %v882
        %v890 = vadd.f32 %v889, %v883
        %v891 = vadd.f32 %v890, %v884
        %v892 = vadd.f32 %v891, %v885
        %v893 = vadd.f32 %v892, %v886
        %v894 = vrot.slane %v893, 4
        %v895 = vadd.f32 %v893, %v894
        %v896 = vrot.slane %v895, 2
        %v897 = vadd.f32 %v895, %v896
        %v898 = vrot.slane %v897, 1
        %v899 = vadd.f32 %v897, %v898
        %v900 = vmul.f32 %v878, 0.015625
        %v901 = vmul.f32 %v899, 0.015625
        %v902 = vmul.f32 %v900, %v900
        %v903 = vsub.f32 %v901, %v902
        %v904 = vmax.f32 %v903, 0.0
        %v905 = vsub.f32 %v858, %v900
        %v906 = vsub.f32 %v859, %v900
        %v907 = vsub.f32 %v860, %v900
        %v908 = vsub.f32 %v861, %v900
        %v909 = vsub.f32 %v862, %v900
        %v910 = vsub.f32 %v863, %v900
        %v911 = vsub.f32 %v864, %v900
        %v912 = vsub.f32 %v865, %v900
        %v913 = vadd.f32 %v904, 1e-05
        %v914 = vrsqrt.pop %v913
        %v915 = vmul.f32 %v905, %v914
        %v916 = vmul.f32 %v906, %v914
        %v917 = vmul.f32 %v907, %v914
        %v918 = vmul.f32 %v908, %v914
        %v919 = vmul.f32 %v909, %v914
        %v920 = vmul.f32 %v910, %v914
        %v921 = vmul.f32 %v911, %v914
        %v922 = vmul.f32 %v912, %v914
        %v923 = vmul.f32 %v915, 0.2
        %v924 = vmul.f32 %v916, 0.2
        %v925 = vmul.f32 %v917, 0.2
        %v926 = vmul.f32 %v918, 0.2
        %v927 = vmul.f32 %v919, 0.2
        %v928 = vmul.f32 %v920, 0.2
        %v929 = vmul.f32 %v921, 0.2
        %v930 = vmul.f32 %v922, 0.2
        %v931 = vmax.f32 %v915, %v923
        %v932 = vmax.f32 %v916, %v924
        %v933 = vmax.f32 %v917, %v925
        %v934 = vmax.f32 %v918, %v926
        %v935 = vmax.f32 %v919, %v927
        %v936 = vmax.f32 %v920, %v928
        %v937 = vmax.f32 %v921, %v929
        %v938 = vmax.f32 %v922, %v930
        %939 = vst [vmem:[%s163] sm:$0xff] %v931
        %940 = vst [vmem:[%s163 + $0x8] sm:$0xff] %v932
        %941 = vst [vmem:[%s163 + $0x10] sm:$0xff] %v933
        %942 = vst [vmem:[%s163 + $0x18] sm:$0xff] %v934
        %943 = vst [vmem:[%s163 + $0x20] sm:$0xff] %v935
        %944 = vst [vmem:[%s163 + $0x28] sm:$0xff] %v936
        %945 = vst [vmem:[%s163 + $0x30] sm:$0xff] %v937
        %946 = vst [vmem:[%s163 + $0x38] sm:$0xff] %v938
        %s947 = sand.u32 %s90, 1
        %s948 = scalar_lea.sflag [#allocation3], %s947
        %s949 = sand.u32 %s90, 1
        %s950 = smul.addr %s949, 64
        %s951 = scalar_lea.vmem [#allocation2], %s950
        // Predicated region
        $region29: #{tpu_custom_call.1} parent=27 // pred_check
          %p952 = pneg %p100
        $region30: #{tpu_custom_call.1} parent=27 // pred_check_branch
          %954 = sbr.rel (%p952) target = $region32
        $region31: #{tpu_custom_call.1} parent=27 // pred_region
          %s956 = ssub.s32 1024, 1024
          %957 = vsyncadd %s948, %s956
          %s958 = smul.addr %s20, 8
          %s959 = sadd.s32 %s21, %s958
          %s960 = smul.addr %s959, 128
          %s961 = scalar_lea.hbm %s2, %s960
          %s962 = sshll.u32 %s951, 4
          %s963 = int_to_ptr.vmem [resolvable:$true] %s962
          %968 = dma.vmem_to_hbm [thread:$0]  %s963, 1024, %s961, %s948, 128, 128, 8
        $region32: #{tpu_custom_call.1} parent=27 // pred_fallthru
          _
      $region28: #{tpu_custom_call.1} parent=5 // pred_fallthru
        _
      %p969 = scmp.le.s32.totalorder 2, %s11
      // Predicated region
      $region33: #{tpu_custom_call.1} parent=5 // pred_check
        %p970 = pneg %p969
      $region34: #{tpu_custom_call.1} parent=5 // pred_check_branch
        %972 = sbr.rel (%p970) target = $region36
      $region35: #{tpu_custom_call.1} parent=5 // pred_region
        %s973 = ssub.s32 %s11, 2
        // Predicated region
        $region37: #{tpu_custom_call.1} parent=35 // pred_check
          %p974 = pneg %p106
        $region38: #{tpu_custom_call.1} parent=35 // pred_check_branch
          %976 = sbr.rel (%p974) target = $region40
        $region39: #{tpu_custom_call.1} parent=35 // pred_region
          %s977 = sand.u32 %s91, 1
          %s978 = scalar_lea.sflag [#allocation3], %s977
          %s979 = sand.u32 %s91, 1
          %s980 = smul.addr %s979, 64
          %s981 = scalar_lea.vmem [#allocation2], %s980
          %982 = dma.done %s978, 1024
        $region40: #{tpu_custom_call.1} parent=35 // pred_fallthru
          _
      $region36: #{tpu_custom_call.1} parent=5 // pred_fallthru
        _
    $region6: #{tpu_custom_call.1} parent=1 // loop_footer
      %s15 = sadd.s32 1, %s11
    $region7: #{tpu_custom_call.1} parent=1 // loop_footer_branch
      %10 = sbr.rel target = $region3
    $region8: #{tpu_custom_call.1} parent=1 // loop_exit
      _
    %983 = vsyncpa [#allocation3], 1
    %s984 = scalar_lea.sflag [#allocation3], 1
    %985 = vsyncpa %s984, 1

</llo_original>
